<compile_context>
chip_gen: v7x
topology: tpu7x:2x2x1
jax: 0.10.0
libtpu: 0.0.40
codegen_flags: <defaults>
</compile_context>

<pallas_src>
import functools

import jax
import jax.numpy as jnp
from jax.experimental import pallas as pl
from jax.experimental.pallas import tpu as pltpu


def _quantization_kernel(x_ref, out_ref, *, B: int):
    """Quantize + bit-expand one (TB, TN) tile into a (TB, TN*B) tile.

    x_ref:   (TB, TN)    float32 in VMEM
    out_ref: (TB, TN*B)  float32 in VMEM  (column i*B + j = bit B-1-j of q[:, i])
    """
    tb, tn = x_ref.shape
    x = x_ref[...]                                    # (TB, TN) f32
    step = float(2 ** B)
    # torch.round is round-half-to-even; jnp.round matches.
    q = jnp.round(x * step - 0.5)
    # emulate `.type(torch.uint8)` wrap (valid for the intended [0, 1) domain).
    q = q.astype(jnp.int32) & 0xFF                    # (TB, TN) i32

    # Interleave: repeat each quantized value B times along the lane axis so
    # that column c = i*B + j carries q[:, i] (XLU work; VPU/lanes stay dense).
    qe = jnp.repeat(q, B, axis=-1)                    # (TB, TN*B) i32

    # Per-column shift pattern [B-1, B-2, ..., 0] tiled across TN features.
    col = jax.lax.broadcasted_iota(jnp.int32, (tb, tn * B), 1)
    shifts = (B - 1) - (col % B)

    bits = jax.lax.shift_right_logical(qe, shifts) & 1
    out_ref[...] = bits.astype(jnp.float32)


def quantization_layer(x: jax.Array, B: int, *, tb_max: int = 512,
                       tn_max: int = 512) -> jax.Array:
    """Forward pass of QuantizationLayer: (b, n) float32 -> (b, n*B) float32 bits."""
    b, n = x.shape
    # Block shape must either divide (8, 128) or equal the full array dims.
    TB = b if b <= tb_max else tb_max          # full dim, or 512 (÷8)
    TN = n if n <= tn_max else tn_max          # full dim, or 512 (÷128); out 512*B ÷128
    grid = (pl.cdiv(b, TB), pl.cdiv(n, TN))

    cost = pl.CostEstimate(
        flops=6 * b * n + 3 * b * n * B,       # quantize + per-bit shift/and/cast
        transcendentals=0,
        bytes_accessed=b * n * 4 + b * n * B * 4,
    )

    return pl.pallas_call(
        functools.partial(_quantization_kernel, B=B),
        out_shape=jax.ShapeDtypeStruct((b, n * B), jnp.float32),
        grid=grid,
        in_specs=[pl.BlockSpec((TB, TN), lambda i, j: (i, j))],
        out_specs=pl.BlockSpec((TB, TN * B), lambda i, j: (i, j)),
        compiler_params=pltpu.CompilerParams(
            dimension_semantics=("parallel", "parallel")),
        cost_estimate=cost,
    )(x)


def _reference(x, B):
    """Pure-JAX reference mirroring the PyTorch code (for [0,1) inputs)."""
    step = 2 ** B
    q = jnp.round(x * step - 0.5).astype(jnp.int32) & 0xFF
    shifts = jnp.arange(B - 1, -1, -1, dtype=jnp.int32)
    bits = (q[:, :, None] >> shifts[None, None, :]) & 1
    return bits.reshape(x.shape[0], x.shape[1] * B).astype(jnp.float32)


if __name__ == "__main__":
    key = jax.random.PRNGKey(0)

    # Primary small test (single-tile path).
    B = 4
    batch, feat = 4, 128
    x = jax.random.uniform(key, (batch, feat), dtype=jnp.float32)
    out = jax.block_until_ready(quantization_layer(x, B))
    ref = _reference(x, B)
    assert out.shape == (batch, feat * B), out.shape
    assert out.dtype == jnp.float32
    assert bool(jnp.all(out == ref)), "mismatch vs reference (single tile)"

    # Secondary test exercising the tiled grid + partial blocks (n > TN, odd B).
    B2 = 3
    batch2, feat2 = 8, 640
    x2 = jax.random.uniform(jax.random.PRNGKey(1), (batch2, feat2),
                            dtype=jnp.float32)
    out2 = jax.block_until_ready(quantization_layer(x2, B2))
    ref2 = _reference(x2, B2)
    assert out2.shape == (batch2, feat2 * B2), out2.shape
    assert bool(jnp.all(out2 == ref2)), "mismatch vs reference (tiled grid)"

    print("KERNEL_OK")
</pallas_src>

<mosaic_0001>
module attributes {stable_mosaic.version = 11 : i64} {
  func.func @_quantization_kernel(%arg0: i32, %arg1: i32, %arg2: memref<4x128xf32, #tpu.memory_space<vmem>>, %arg3: memref<4x512xf32, #tpu.memory_space<vmem>>) attributes {dimension_semantics = [#tpu.dimension_semantics<parallel>, #tpu.dimension_semantics<parallel>], iteration_bounds = array<i64: 1, 1>, scalar_prefetch = 0 : i64, scratch_operands = 0 : i64, tpu.core_type = #tpu.core_type<tc>, window_params = [{transform_indices = @transform_0, window_bounds = array<i64: 4, 128>}, {transform_indices = @transform_1, window_bounds = array<i64: 4, 512>}]} {
    %c0 = arith.constant 0 : index
    %c0_0 = arith.constant 0 : index
    %0 = vector.load %arg2[%c0, %c0_0] : memref<4x128xf32, #tpu.memory_space<vmem>>, vector<4x128xf32>
    %cst = arith.constant 1.600000e+01 : f32
    %1 = vector.broadcast %cst : f32 to vector<4x128xf32>
    %2 = arith.mulf %0, %1 : vector<4x128xf32>
    %cst_1 = arith.constant 5.000000e-01 : f32
    %3 = vector.broadcast %cst_1 : f32 to vector<4x128xf32>
    %4 = arith.subf %2, %3 : vector<4x128xf32>
    %5 = math.roundeven %4 : vector<4x128xf32>
    %6 = arith.fptosi %5 : vector<4x128xf32> to vector<4x128xi32>
    %c255_i32 = arith.constant 255 : i32
    %7 = vector.broadcast %c255_i32 : i32 to vector<4x128xi32>
    %8 = arith.andi %6, %7 : vector<4x128xi32>
    %9 = vector.shape_cast %8 : vector<4x128xi32> to vector<4x128x1xi32>
    %10 = vector.broadcast %9 : vector<4x128x1xi32> to vector<4x128x4xi32>
    %11 = vector.shape_cast %10 : vector<4x128x4xi32> to vector<4x512xi32>
    %12 = tpu.iota {dimensions = array<i32: 1>} : vector<4x512xi32>
    %c4_i32 = arith.constant 4 : i32
    %c0_i32 = arith.constant 0 : i32
    %13 = arith.cmpi eq, %c4_i32, %c0_i32 : i32
    %c1_i32 = arith.constant 1 : i32
    %14 = arith.select %13, %c1_i32, %c4_i32 : i32
    %15 = vector.broadcast %14 : i32 to vector<4x512xi32>
    %16 = arith.remsi %12, %15 : vector<4x512xi32>
    %c0_i32_2 = arith.constant 0 : i32
    %17 = vector.broadcast %c0_i32_2 : i32 to vector<4x512xi32>
    %18 = arith.cmpi ne, %16, %17 : vector<4x512xi32>
    %c0_i32_3 = arith.constant 0 : i32
    %19 = vector.broadcast %c0_i32_3 : i32 to vector<4x512xi32>
    %20 = arith.cmpi slt, %16, %19 : vector<4x512xi32>
    %c0_i32_4 = arith.constant 0 : i32
    %21 = arith.cmpi slt, %14, %c0_i32_4 : i32
    %22 = vector.broadcast %21 : i1 to vector<4x512xi1>
    %23 = vector.broadcast %22 : vector<4x512xi1> to vector<4x512xi1>
    %24 = arith.xori %20, %23 : vector<4x512xi1>
    %25 = arith.andi %24, %18 : vector<4x512xi1>
    %26 = vector.broadcast %14 : i32 to vector<4x512xi32>
    %27 = arith.addi %16, %26 : vector<4x512xi32>
    %28 = arith.select %25, %27, %16 : vector<4x512xi1>, vector<4x512xi32>
    %c3_i32 = arith.constant 3 : i32
    %29 = vector.broadcast %c3_i32 : i32 to vector<4x512xi32>
    %30 = arith.subi %29, %28 : vector<4x512xi32>
    %31 = arith.shrui %11, %30 : vector<4x512xi32>
    %c1_i32_5 = arith.constant 1 : i32
    %32 = vector.broadcast %c1_i32_5 : i32 to vector<4x512xi32>
    %33 = arith.andi %31, %32 : vector<4x512xi32>
    %34 = arith.sitofp %33 : vector<4x512xi32> to vector<4x512xf32>
    %c0_6 = arith.constant 0 : index
    %c0_7 = arith.constant 0 : index
    %35 = vector.load %arg3[%c0_6, %c0_7] : memref<4x512xf32, #tpu.memory_space<vmem>>, vector<4x512xf32>
    tpu.vector_store %arg3[%c0_6, %c0_7], %34 {strides = array<i32>} : memref<4x512xf32, #tpu.memory_space<vmem>>, vector<4x512xf32>,
    return
  }
  func.func @transform_0(%arg0: i32, %arg1: i32) -> (i32, i32) {
    %c0_i32 = arith.constant 0 : i32
    return %arg0, %arg1 : i32, i32
  }
  func.func @transform_1(%arg0: i32, %arg1: i32) -> (i32, i32) {
    %c0_i32 = arith.constant 0 : i32
    return %arg0, %arg1 : i32, i32
  }
}

</mosaic_0001>

<llo_original>
// kernel: tpu_custom_call.1
$region0: #{tpu_custom_call.1}
  #allocation0 [shape = 'u32[]', space=smem, size = 0x4, offset = 0x4, fixed_abs, tag = 'smem constant byte address 0x4 - core index']
  #allocation1 [shape = 'u32[144,128]{1,0:T(1,128)}', space=vmem, size = 0x12000, scoped, tag = 'internal scratch']
  %s0 = inlined_call_operand.hbm [shape: f32[4,128], index: 0, kind: input, shape index: {}]
  %s1 = inlined_call_operand.hbm [shape: f32[4,512], index: 1, kind: output, shape index: {}]
  %s2 = sld [smem:[#allocation0]]
  $region18: #{tpu_custom_call.1} parent=0
    _
  %s4 = ssub.s32 1, %s2
  %s5 = scalar_select 0, %s4, %s2
  $region1: #{tpu_custom_call.1} parent=0
    #allocation2 [shape = 'u8[2048]{0}', space=vmem, size = 0x800, scoped, tag = 'input window, operand 0, single buffered']
    #allocation3 [shape = 's32[1]{0}', space=sflag, size = 0x4, scoped, tag = 'scoped memory for tpu_custom_call.1']
    #allocation4 [shape = 's32[1]{0}', space=sflag, size = 0x4, scoped, tag = 'scoped memory for tpu_custom_call.1']
    #allocation5 [shape = 'u8[8192]{0}', space=vmem, size = 0x2000, scoped, tag = 'output window, operand 0, single buffered']
    %6 = vsyncpa [#allocation3], 0
    %7 = vsyncpa [#allocation4], 0
    // Predicated region
    $region2: #{tpu_custom_call.1} parent=1 // pred_check
      _
    $region3: #{tpu_custom_call.1} parent=1 // pred_check_branch
      %9 = sbr.rel (0) target = $region5
    $region4: #{tpu_custom_call.1} parent=1 // pred_region
      %s11 = ssub.s32 64, 64
      %12 = vsyncadd [#allocation3], %s11
      %s14 = sshll.u32 [#allocation2], 4
      %s15 = int_to_ptr.vmem [resolvable:$true] %s14
      %17 = dma.hbm_to_vmem [thread:$0]  %s0, 64, %s15, [#allocation3]
    $region5: #{tpu_custom_call.1} parent=1 // pred_fallthru
      _
    // Predicated region
    $region6: #{tpu_custom_call.1} parent=1 // pred_check
      _
    $region7: #{tpu_custom_call.1} parent=1 // pred_check_branch
      %19 = sbr.rel (0) target = $region9
    $region8: #{tpu_custom_call.1} parent=1 // pred_region
      %20 = dma.done [#allocation3], 64
    $region9: #{tpu_custom_call.1} parent=1 // pred_fallthru
      _
    %v21 = vld [vmem:[#allocation2] sm:$0xf]
    %v22 = vmul.f32 %v21, 16.0
    %v23 = vsub.f32 %v22, 0.5
    %v24 = vcvt.f32.s32.ties.to.even %v23
    %v25 = vand.u32 %v24, 255
    %v26 = vlaneseq
    %v27 = vshrl.u32 %v26, 7
    %v28 = vsub.s32 0, %v27
    %v29 = vrot.slane %v25, %v28
    %31 = vbcast.lane.b32.xlu0 %v29, 256
    %v32 = vpop.permute.xlu0 %31
    %s34 = sor.u32 256, 8
    %35 = vbcast.lane.b32.xlu0 %v29, %s34
    %v36 = vpop.permute.xlu0 %35
    %s38 = sor.u32 256, 16
    %39 = vbcast.lane.b32.xlu0 %v29, %s38
    %v40 = vpop.permute.xlu0 %39
    %s42 = sor.u32 256, 24
    %43 = vbcast.lane.b32.xlu0 %v29, %s42
    %v44 = vpop.permute.xlu0 %43
    %s46 = sor.u32 256, 32
    %47 = vbcast.lane.b32.xlu0 %v29, %s46
    %v48 = vpop.permute.xlu0 %47
    %s50 = sor.u32 256, 40
    %51 = vbcast.lane.b32.xlu0 %v29, %s50
    %v52 = vpop.permute.xlu0 %51
    %s54 = sor.u32 256, 48
    %55 = vbcast.lane.b32.xlu0 %v29, %s54
    %v56 = vpop.permute.xlu0 %55
    %s58 = sor.u32 256, 56
    %59 = vbcast.lane.b32.xlu0 %v29, %s58
    %v60 = vpop.permute.xlu0 %59
    %s62 = sor.u32 256, 64
    %63 = vbcast.lane.b32.xlu0 %v29, %s62
    %v64 = vpop.permute.xlu0 %63
    %s66 = sor.u32 256, 72
    %67 = vbcast.lane.b32.xlu0 %v29, %s66
    %v68 = vpop.permute.xlu0 %67
    %s70 = sor.u32 256, 80
    %71 = vbcast.lane.b32.xlu0 %v29, %s70
    %v72 = vpop.permute.xlu0 %71
    %s74 = sor.u32 256, 88
    %75 = vbcast.lane.b32.xlu0 %v29, %s74
    %v76 = vpop.permute.xlu0 %75
    %s78 = sor.u32 256, 96
    %79 = vbcast.lane.b32.xlu0 %v29, %s78
    %v80 = vpop.permute.xlu0 %79
    %s82 = sor.u32 256, 104
    %83 = vbcast.lane.b32.xlu0 %v29, %s82
    %v84 = vpop.permute.xlu0 %83
    %s86 = sor.u32 256, 112
    %87 = vbcast.lane.b32.xlu0 %v29, %s86
    %v88 = vpop.permute.xlu0 %87
    %s90 = sor.u32 256, 120
    %91 = vbcast.lane.b32.xlu0 %v29, %s90
    %v92 = vpop.permute.xlu0 %91
    %v93 = vlaneseq
    %v94 = vshrl.u32 %v93, 7
    %v95 = vsub.s32 1, %v94
    %v96 = vrot.slane %v25, %v95
    %98 = vbcast.lane.b32.xlu0 %v96, 256
    %v99 = vpop.permute.xlu0 %98
    %s101 = sor.u32 256, 8
    %102 = vbcast.lane.b32.xlu0 %v96, %s101
    %v103 = vpop.permute.xlu0 %102
    %s105 = sor.u32 256, 16
    %106 = vbcast.lane.b32.xlu0 %v96, %s105
    %v107 = vpop.permute.xlu0 %106
    %s109 = sor.u32 256, 24
    %110 = vbcast.lane.b32.xlu0 %v96, %s109
    %v111 = vpop.permute.xlu0 %110
    %s113 = sor.u32 256, 32
    %114 = vbcast.lane.b32.xlu0 %v96, %s113
    %v115 = vpop.permute.xlu0 %114
    %s117 = sor.u32 256, 40
    %118 = vbcast.lane.b32.xlu0 %v96, %s117
    %v119 = vpop.permute.xlu0 %118
    %s121 = sor.u32 256, 48
    %122 = vbcast.lane.b32.xlu0 %v96, %s121
    %v123 = vpop.permute.xlu0 %122
    %s125 = sor.u32 256, 56
    %126 = vbcast.lane.b32.xlu0 %v96, %s125
    %v127 = vpop.permute.xlu0 %126
    %s129 = sor.u32 256, 64
    %130 = vbcast.lane.b32.xlu0 %v96, %s129
    %v131 = vpop.permute.xlu0 %130
    %s133 = sor.u32 256, 72
    %134 = vbcast.lane.b32.xlu0 %v96, %s133
    %v135 = vpop.permute.xlu0 %134
    %s137 = sor.u32 256, 80
    %138 = vbcast.lane.b32.xlu0 %v96, %s137
    %v139 = vpop.permute.xlu0 %138
    %s141 = sor.u32 256, 88
    %142 = vbcast.lane.b32.xlu0 %v96, %s141
    %v143 = vpop.permute.xlu0 %142
    %s145 = sor.u32 256, 96
    %146 = vbcast.lane.b32.xlu0 %v96, %s145
    %v147 = vpop.permute.xlu0 %146
    %s149 = sor.u32 256, 104
    %150 = vbcast.lane.b32.xlu0 %v96, %s149
    %v151 = vpop.permute.xlu0 %150
    %s153 = sor.u32 256, 112
    %154 = vbcast.lane.b32.xlu0 %v96, %s153
    %v155 = vpop.permute.xlu0 %154
    %s157 = sor.u32 256, 120
    %158 = vbcast.lane.b32.xlu0 %v96, %s157
    %v159 = vpop.permute.xlu0 %158
    %v160 = vlaneseq
    %v161 = vshrl.u32 %v160, 7
    %v162 = vsub.s32 2, %v161
    %v163 = vrot.slane %v25, %v162
    %165 = vbcast.lane.b32.xlu0 %v163, 256
    %v166 = vpop.permute.xlu0 %165
    %s168 = sor.u32 256, 8
    %169 = vbcast.lane.b32.xlu0 %v163, %s168
    %v170 = vpop.permute.xlu0 %169
    %s172 = sor.u32 256, 16
    %173 = vbcast.lane.b32.xlu0 %v163, %s172
    %v174 = vpop.permute.xlu0 %173
    %s176 = sor.u32 256, 24
    %177 = vbcast.lane.b32.xlu0 %v163, %s176
    %v178 = vpop.permute.xlu0 %177
    %s180 = sor.u32 256, 32
    %181 = vbcast.lane.b32.xlu0 %v163, %s180
    %v182 = vpop.permute.xlu0 %181
    %s184 = sor.u32 256, 40
    %185 = vbcast.lane.b32.xlu0 %v163, %s184
    %v186 = vpop.permute.xlu0 %185
    %s188 = sor.u32 256, 48
    %189 = vbcast.lane.b32.xlu0 %v163, %s188
    %v190 = vpop.permute.xlu0 %189
    %s192 = sor.u32 256, 56
    %193 = vbcast.lane.b32.xlu0 %v163, %s192
    %v194 = vpop.permute.xlu0 %193
    %s196 = sor.u32 256, 64
    %197 = vbcast.lane.b32.xlu0 %v163, %s196
    %v198 = vpop.permute.xlu0 %197
    %s200 = sor.u32 256, 72
    %201 = vbcast.lane.b32.xlu0 %v163, %s200
    %v202 = vpop.permute.xlu0 %201
    %s204 = sor.u32 256, 80
    %205 = vbcast.lane.b32.xlu0 %v163, %s204
    %v206 = vpop.permute.xlu0 %205
    %s208 = sor.u32 256, 88
    %209 = vbcast.lane.b32.xlu0 %v163, %s208
    %v210 = vpop.permute.xlu0 %209
    %s212 = sor.u32 256, 96
    %213 = vbcast.lane.b32.xlu0 %v163, %s212
    %v214 = vpop.permute.xlu0 %213
    %s216 = sor.u32 256, 104
    %217 = vbcast.lane.b32.xlu0 %v163, %s216
    %v218 = vpop.permute.xlu0 %217
    %s220 = sor.u32 256, 112
    %221 = vbcast.lane.b32.xlu0 %v163, %s220
    %v222 = vpop.permute.xlu0 %221
    %s224 = sor.u32 256, 120
    %225 = vbcast.lane.b32.xlu0 %v163, %s224
    %v226 = vpop.permute.xlu0 %225
    %v227 = vlaneseq
    %v228 = vshrl.u32 %v227, 7
    %v229 = vsub.s32 3, %v228
    %v230 = vrot.slane %v25, %v229
    %232 = vbcast.lane.b32.xlu0 %v230, 256
    %v233 = vpop.permute.xlu0 %232
    %s235 = sor.u32 256, 8
    %236 = vbcast.lane.b32.xlu0 %v230, %s235
    %v237 = vpop.permute.xlu0 %236
    %s239 = sor.u32 256, 16
    %240 = vbcast.lane.b32.xlu0 %v230, %s239
    %v241 = vpop.permute.xlu0 %240
    %s243 = sor.u32 256, 24
    %244 = vbcast.lane.b32.xlu0 %v230, %s243
    %v245 = vpop.permute.xlu0 %244
    %s247 = sor.u32 256, 32
    %248 = vbcast.lane.b32.xlu0 %v230, %s247
    %v249 = vpop.permute.xlu0 %248
    %s251 = sor.u32 256, 40
    %252 = vbcast.lane.b32.xlu0 %v230, %s251
    %v253 = vpop.permute.xlu0 %252
    %s255 = sor.u32 256, 48
    %256 = vbcast.lane.b32.xlu0 %v230, %s255
    %v257 = vpop.permute.xlu0 %256
    %s259 = sor.u32 256, 56
    %260 = vbcast.lane.b32.xlu0 %v230, %s259
    %v261 = vpop.permute.xlu0 %260
    %s263 = sor.u32 256, 64
    %264 = vbcast.lane.b32.xlu0 %v230, %s263
    %v265 = vpop.permute.xlu0 %264
    %s267 = sor.u32 256, 72
    %268 = vbcast.lane.b32.xlu0 %v230, %s267
    %v269 = vpop.permute.xlu0 %268
    %s271 = sor.u32 256, 80
    %272 = vbcast.lane.b32.xlu0 %v230, %s271
    %v273 = vpop.permute.xlu0 %272
    %s275 = sor.u32 256, 88
    %276 = vbcast.lane.b32.xlu0 %v230, %s275
    %v277 = vpop.permute.xlu0 %276
    %s279 = sor.u32 256, 96
    %280 = vbcast.lane.b32.xlu0 %v230, %s279
    %v281 = vpop.permute.xlu0 %280
    %s283 = sor.u32 256, 104
    %284 = vbcast.lane.b32.xlu0 %v230, %s283
    %v285 = vpop.permute.xlu0 %284
    %s287 = sor.u32 256, 112
    %288 = vbcast.lane.b32.xlu0 %v230, %s287
    %v289 = vpop.permute.xlu0 %288
    %s291 = sor.u32 256, 120
    %292 = vbcast.lane.b32.xlu0 %v230, %s291
    %v293 = vpop.permute.xlu0 %292
    %v294 = vcombine.low %v32, %v166
    %v295 = vcombine.high %v32, %v166
    %v297 = vunpack.c.l.s4 1983009808
    %v298 = vunpack.c.0.s8 %v297
    %v299 = vlaneseq
    %v300 = vshrl.u32 %v299, 7
    %v301 = vsub.s32 %v298, %v300
    %v302 = vrot.slane %v294, %v301
    %v304 = vunpack.c.l.s4 1983009808
    %v305 = vunpack.c.0.s8 %v304
    %v306 = vlaneseq
    %v307 = vshrl.u32 %v306, 7
    %v308 = vsub.s32 %v305, %v307
    %v309 = vrot.slane %v295, %v308
    %v310 = vcombine.low %v99, %v233
    %v311 = vcombine.high %v99, %v233
    %v313 = vunpack.c.l.s4 1983009808
    %v314 = vunpack.c.0.s8 %v313
    %v315 = vlaneseq
    %v316 = vshrl.u32 %v315, 7
    %v317 = vsub.s32 %v314, %v316
    %v318 = vrot.slane %v310, %v317
    %v320 = vunpack.c.l.s4 1983009808
    %v321 = vunpack.c.0.s8 %v320
    %v322 = vlaneseq
    %v323 = vshrl.u32 %v322, 7
    %v324 = vsub.s32 %v321, %v323
    %v325 = vrot.slane %v311, %v324
    %v326 = vcombine.low %v302, %v318
    %v327 = vcombine.high %v302, %v318
    %v329 = vunpack.c.l.s4 1934713408
    %v330 = vunpack.c.0.s8 %v329
    %v331 = vlaneseq
    %v332 = vshrl.u32 %v331, 7
    %v333 = vsub.s32 %v330, %v332
    %v334 = vrot.slane %v326, %v333
    %v336 = vunpack.c.l.s4 1934713408
    %v337 = vunpack.c.0.s8 %v336
    %v338 = vlaneseq
    %v339 = vshrl.u32 %v338, 7
    %v340 = vsub.s32 %v337, %v339
    %v341 = vrot.slane %v327, %v340
    %v342 = vcombine.low %v309, %v325
    %v343 = vcombine.high %v309, %v325
    %v345 = vunpack.c.l.s4 1934713408
    %v346 = vunpack.c.0.s8 %v345
    %v347 = vlaneseq
    %v348 = vshrl.u32 %v347, 7
    %v349 = vsub.s32 %v346, %v348
    %v350 = vrot.slane %v342, %v349
    %v352 = vunpack.c.l.s4 1934713408
    %v353 = vunpack.c.0.s8 %v352
    %v354 = vlaneseq
    %v355 = vshrl.u32 %v354, 7
    %v356 = vsub.s32 %v353, %v355
    %v357 = vrot.slane %v343, %v356
    %v358 = vcombine.high %v334, 0
    %v359 = vcombine.high %v341, 0
    %v360 = vcombine.high %v350, 0
    %v361 = vcombine.high %v357, 0
    %v362 = vcombine.low %v36, %v170
    %v363 = vcombine.high %v36, %v170
    %v365 = vunpack.c.l.s4 1983009808
    %v366 = vunpack.c.0.s8 %v365
    %v367 = vlaneseq
    %v368 = vshrl.u32 %v367, 7
    %v369 = vsub.s32 %v366, %v368
    %v370 = vrot.slane %v362, %v369
    %v372 = vunpack.c.l.s4 1983009808
    %v373 = vunpack.c.0.s8 %v372
    %v374 = vlaneseq
    %v375 = vshrl.u32 %v374, 7
    %v376 = vsub.s32 %v373, %v375
    %v377 = vrot.slane %v363, %v376
    %v378 = vcombine.low %v103, %v237
    %v379 = vcombine.high %v103, %v237
    %v381 = vunpack.c.l.s4 1983009808
    %v382 = vunpack.c.0.s8 %v381
    %v383 = vlaneseq
    %v384 = vshrl.u32 %v383, 7
    %v385 = vsub.s32 %v382, %v384
    %v386 = vrot.slane %v378, %v385
    %v388 = vunpack.c.l.s4 1983009808
    %v389 = vunpack.c.0.s8 %v388
    %v390 = vlaneseq
    %v391 = vshrl.u32 %v390, 7
    %v392 = vsub.s32 %v389, %v391
    %v393 = vrot.slane %v379, %v392
    %v394 = vcombine.low %v370, %v386
    %v395 = vcombine.high %v370, %v386
    %v397 = vunpack.c.l.s4 1934713408
    %v398 = vunpack.c.0.s8 %v397
    %v399 = vlaneseq
    %v400 = vshrl.u32 %v399, 7
    %v401 = vsub.s32 %v398, %v400
    %v402 = vrot.slane %v394, %v401
    %v404 = vunpack.c.l.s4 1934713408
    %v405 = vunpack.c.0.s8 %v404
    %v406 = vlaneseq
    %v407 = vshrl.u32 %v406, 7
    %v408 = vsub.s32 %v405, %v407
    %v409 = vrot.slane %v395, %v408
    %v410 = vcombine.low %v377, %v393
    %v411 = vcombine.high %v377, %v393
    %v413 = vunpack.c.l.s4 1934713408
    %v414 = vunpack.c.0.s8 %v413
    %v415 = vlaneseq
    %v416 = vshrl.u32 %v415, 7
    %v417 = vsub.s32 %v414, %v416
    %v418 = vrot.slane %v410, %v417
    %v420 = vunpack.c.l.s4 1934713408
    %v421 = vunpack.c.0.s8 %v420
    %v422 = vlaneseq
    %v423 = vshrl.u32 %v422, 7
    %v424 = vsub.s32 %v421, %v423
    %v425 = vrot.slane %v411, %v424
    %v426 = vcombine.high %v402, 0
    %v427 = vcombine.high %v409, 0
    %v428 = vcombine.high %v418, 0
    %v429 = vcombine.high %v425, 0
    %v430 = vcombine.low %v40, %v174
    %v431 = vcombine.high %v40, %v174
    %v433 = vunpack.c.l.s4 1983009808
    %v434 = vunpack.c.0.s8 %v433
    %v435 = vlaneseq
    %v436 = vshrl.u32 %v435, 7
    %v437 = vsub.s32 %v434, %v436
    %v438 = vrot.slane %v430, %v437
    %v440 = vunpack.c.l.s4 1983009808
    %v441 = vunpack.c.0.s8 %v440
    %v442 = vlaneseq
    %v443 = vshrl.u32 %v442, 7
    %v444 = vsub.s32 %v441, %v443
    %v445 = vrot.slane %v431, %v444
    %v446 = vcombine.low %v107, %v241
    %v447 = vcombine.high %v107, %v241
    %v449 = vunpack.c.l.s4 1983009808
    %v450 = vunpack.c.0.s8 %v449
    %v451 = vlaneseq
    %v452 = vshrl.u32 %v451, 7
    %v453 = vsub.s32 %v450, %v452
    %v454 = vrot.slane %v446, %v453
    %v456 = vunpack.c.l.s4 1983009808
    %v457 = vunpack.c.0.s8 %v456
    %v458 = vlaneseq
    %v459 = vshrl.u32 %v458, 7
    %v460 = vsub.s32 %v457, %v459
    %v461 = vrot.slane %v447, %v460
    %v462 = vcombine.low %v438, %v454
    %v463 = vcombine.high %v438, %v454
    %v465 = vunpack.c.l.s4 1934713408
    %v466 = vunpack.c.0.s8 %v465
    %v467 = vlaneseq
    %v468 = vshrl.u32 %v467, 7
    %v469 = vsub.s32 %v466, %v468
    %v470 = vrot.slane %v462, %v469
    %v472 = vunpack.c.l.s4 1934713408
    %v473 = vunpack.c.0.s8 %v472
    %v474 = vlaneseq
    %v475 = vshrl.u32 %v474, 7
    %v476 = vsub.s32 %v473, %v475
    %v477 = vrot.slane %v463, %v476
    %v478 = vcombine.low %v445, %v461
    %v479 = vcombine.high %v445, %v461
    %v481 = vunpack.c.l.s4 1934713408
    %v482 = vunpack.c.0.s8 %v481
    %v483 = vlaneseq
    %v484 = vshrl.u32 %v483, 7
    %v485 = vsub.s32 %v482, %v484
    %v486 = vrot.slane %v478, %v485
    %v488 = vunpack.c.l.s4 1934713408
    %v489 = vunpack.c.0.s8 %v488
    %v490 = vlaneseq
    %v491 = vshrl.u32 %v490, 7
    %v492 = vsub.s32 %v489, %v491
    %v493 = vrot.slane %v479, %v492
    %v494 = vcombine.high %v470, 0
    %v495 = vcombine.high %v477, 0
    %v496 = vcombine.high %v486, 0
    %v497 = vcombine.high %v493, 0
    %v498 = vcombine.low %v44, %v178
    %v499 = vcombine.high %v44, %v178
    %v501 = vunpack.c.l.s4 1983009808
    %v502 = vunpack.c.0.s8 %v501
    %v503 = vlaneseq
    %v504 = vshrl.u32 %v503, 7
    %v505 = vsub.s32 %v502, %v504
    %v506 = vrot.slane %v498, %v505
    %v508 = vunpack.c.l.s4 1983009808
    %v509 = vunpack.c.0.s8 %v508
    %v510 = vlaneseq
    %v511 = vshrl.u32 %v510, 7
    %v512 = vsub.s32 %v509, %v511
    %v513 = vrot.slane %v499, %v512
    %v514 = vcombine.low %v111, %v245
    %v515 = vcombine.high %v111, %v245
    %v517 = vunpack.c.l.s4 1983009808
    %v518 = vunpack.c.0.s8 %v517
    %v519 = vlaneseq
    %v520 = vshrl.u32 %v519, 7
    %v521 = vsub.s32 %v518, %v520
    %v522 = vrot.slane %v514, %v521
    %v524 = vunpack.c.l.s4 1983009808
    %v525 = vunpack.c.0.s8 %v524
    %v526 = vlaneseq
    %v527 = vshrl.u32 %v526, 7
    %v528 = vsub.s32 %v525, %v527
    %v529 = vrot.slane %v515, %v528
    %v530 = vcombine.low %v506, %v522
    %v531 = vcombine.high %v506, %v522
    %v533 = vunpack.c.l.s4 1934713408
    %v534 = vunpack.c.0.s8 %v533
    %v535 = vlaneseq
    %v536 = vshrl.u32 %v535, 7
    %v537 = vsub.s32 %v534, %v536
    %v538 = vrot.slane %v530, %v537
    %v540 = vunpack.c.l.s4 1934713408
    %v541 = vunpack.c.0.s8 %v540
    %v542 = vlaneseq
    %v543 = vshrl.u32 %v542, 7
    %v544 = vsub.s32 %v541, %v543
    %v545 = vrot.slane %v531, %v544
    %v546 = vcombine.low %v513, %v529
    %v547 = vcombine.high %v513, %v529
    %v549 = vunpack.c.l.s4 1934713408
    %v550 = vunpack.c.0.s8 %v549
    %v551 = vlaneseq
    %v552 = vshrl.u32 %v551, 7
    %v553 = vsub.s32 %v550, %v552
    %v554 = vrot.slane %v546, %v553
    %v556 = vunpack.c.l.s4 1934713408
    %v557 = vunpack.c.0.s8 %v556
    %v558 = vlaneseq
    %v559 = vshrl.u32 %v558, 7
    %v560 = vsub.s32 %v557, %v559
    %v561 = vrot.slane %v547, %v560
    %v562 = vcombine.high %v538, 0
    %v563 = vcombine.high %v545, 0
    %v564 = vcombine.high %v554, 0
    %v565 = vcombine.high %v561, 0
    %v566 = vcombine.low %v48, %v182
    %v567 = vcombine.high %v48, %v182
    %v569 = vunpack.c.l.s4 1983009808
    %v570 = vunpack.c.0.s8 %v569
    %v571 = vlaneseq
    %v572 = vshrl.u32 %v571, 7
    %v573 = vsub.s32 %v570, %v572
    %v574 = vrot.slane %v566, %v573
    %v576 = vunpack.c.l.s4 1983009808
    %v577 = vunpack.c.0.s8 %v576
    %v578 = vlaneseq
    %v579 = vshrl.u32 %v578, 7
    %v580 = vsub.s32 %v577, %v579
    %v581 = vrot.slane %v567, %v580
    %v582 = vcombine.low %v115, %v249
    %v583 = vcombine.high %v115, %v249
    %v585 = vunpack.c.l.s4 1983009808
    %v586 = vunpack.c.0.s8 %v585
    %v587 = vlaneseq
    %v588 = vshrl.u32 %v587, 7
    %v589 = vsub.s32 %v586, %v588
    %v590 = vrot.slane %v582, %v589
    %v592 = vunpack.c.l.s4 1983009808
    %v593 = vunpack.c.0.s8 %v592
    %v594 = vlaneseq
    %v595 = vshrl.u32 %v594, 7
    %v596 = vsub.s32 %v593, %v595
    %v597 = vrot.slane %v583, %v596
    %v598 = vcombine.low %v574, %v590
    %v599 = vcombine.high %v574, %v590
    %v601 = vunpack.c.l.s4 1934713408
    %v602 = vunpack.c.0.s8 %v601
    %v603 = vlaneseq
    %v604 = vshrl.u32 %v603, 7
    %v605 = vsub.s32 %v602, %v604
    %v606 = vrot.slane %v598, %v605
    %v608 = vunpack.c.l.s4 1934713408
    %v609 = vunpack.c.0.s8 %v608
    %v610 = vlaneseq
    %v611 = vshrl.u32 %v610, 7
    %v612 = vsub.s32 %v609, %v611
    %v613 = vrot.slane %v599, %v612
    %v614 = vcombine.low %v581, %v597
    %v615 = vcombine.high %v581, %v597
    %v617 = vunpack.c.l.s4 1934713408
    %v618 = vunpack.c.0.s8 %v617
    %v619 = vlaneseq
    %v620 = vshrl.u32 %v619, 7
    %v621 = vsub.s32 %v618, %v620
    %v622 = vrot.slane %v614, %v621
    %v624 = vunpack.c.l.s4 1934713408
    %v625 = vunpack.c.0.s8 %v624
    %v626 = vlaneseq
    %v627 = vshrl.u32 %v626, 7
    %v628 = vsub.s32 %v625, %v627
    %v629 = vrot.slane %v615, %v628
    %v630 = vcombine.high %v606, 0
    %v631 = vcombine.high %v613, 0
    %v632 = vcombine.high %v622, 0
    %v633 = vcombine.high %v629, 0
    %v634 = vcombine.low %v52, %v186
    %v635 = vcombine.high %v52, %v186
    %v637 = vunpack.c.l.s4 1983009808
    %v638 = vunpack.c.0.s8 %v637
    %v639 = vlaneseq
    %v640 = vshrl.u32 %v639, 7
    %v641 = vsub.s32 %v638, %v640
    %v642 = vrot.slane %v634, %v641
    %v644 = vunpack.c.l.s4 1983009808
    %v645 = vunpack.c.0.s8 %v644
    %v646 = vlaneseq
    %v647 = vshrl.u32 %v646, 7
    %v648 = vsub.s32 %v645, %v647
    %v649 = vrot.slane %v635, %v648
    %v650 = vcombine.low %v119, %v253
    %v651 = vcombine.high %v119, %v253
    %v653 = vunpack.c.l.s4 1983009808
    %v654 = vunpack.c.0.s8 %v653
    %v655 = vlaneseq
    %v656 = vshrl.u32 %v655, 7
    %v657 = vsub.s32 %v654, %v656
    %v658 = vrot.slane %v650, %v657
    %v660 = vunpack.c.l.s4 1983009808
    %v661 = vunpack.c.0.s8 %v660
    %v662 = vlaneseq
    %v663 = vshrl.u32 %v662, 7
    %v664 = vsub.s32 %v661, %v663
    %v665 = vrot.slane %v651, %v664
    %v666 = vcombine.low %v642, %v658
    %v667 = vcombine.high %v642, %v658
    %v669 = vunpack.c.l.s4 1934713408
    %v670 = vunpack.c.0.s8 %v669
    %v671 = vlaneseq
    %v672 = vshrl.u32 %v671, 7
    %v673 = vsub.s32 %v670, %v672
    %v674 = vrot.slane %v666, %v673
    %v676 = vunpack.c.l.s4 1934713408
    %v677 = vunpack.c.0.s8 %v676
    %v678 = vlaneseq
    %v679 = vshrl.u32 %v678, 7
    %v680 = vsub.s32 %v677, %v679
    %v681 = vrot.slane %v667, %v680
    %v682 = vcombine.low %v649, %v665
    %v683 = vcombine.high %v649, %v665
    %v685 = vunpack.c.l.s4 1934713408
    %v686 = vunpack.c.0.s8 %v685
    %v687 = vlaneseq
    %v688 = vshrl.u32 %v687, 7
    %v689 = vsub.s32 %v686, %v688
    %v690 = vrot.slane %v682, %v689
    %v692 = vunpack.c.l.s4 1934713408
    %v693 = vunpack.c.0.s8 %v692
    %v694 = vlaneseq
    %v695 = vshrl.u32 %v694, 7
    %v696 = vsub.s32 %v693, %v695
    %v697 = vrot.slane %v683, %v696
    %v698 = vcombine.high %v674, 0
    %v699 = vcombine.high %v681, 0
    %v700 = vcombine.high %v690, 0
    %v701 = vcombine.high %v697, 0
    %v702 = vcombine.low %v56, %v190
    %v703 = vcombine.high %v56, %v190
    %v705 = vunpack.c.l.s4 1983009808
    %v706 = vunpack.c.0.s8 %v705
    %v707 = vlaneseq
    %v708 = vshrl.u32 %v707, 7
    %v709 = vsub.s32 %v706, %v708
    %v710 = vrot.slane %v702, %v709
    %v712 = vunpack.c.l.s4 1983009808
    %v713 = vunpack.c.0.s8 %v712
    %v714 = vlaneseq
    %v715 = vshrl.u32 %v714, 7
    %v716 = vsub.s32 %v713, %v715
    %v717 = vrot.slane %v703, %v716
    %v718 = vcombine.low %v123, %v257
    %v719 = vcombine.high %v123, %v257
    %v721 = vunpack.c.l.s4 1983009808
    %v722 = vunpack.c.0.s8 %v721
    %v723 = vlaneseq
    %v724 = vshrl.u32 %v723, 7
    %v725 = vsub.s32 %v722, %v724
    %v726 = vrot.slane %v718, %v725
    %v728 = vunpack.c.l.s4 1983009808
    %v729 = vunpack.c.0.s8 %v728
    %v730 = vlaneseq
    %v731 = vshrl.u32 %v730, 7
    %v732 = vsub.s32 %v729, %v731
    %v733 = vrot.slane %v719, %v732
    %v734 = vcombine.low %v710, %v726
    %v735 = vcombine.high %v710, %v726
    %v737 = vunpack.c.l.s4 1934713408
    %v738 = vunpack.c.0.s8 %v737
    %v739 = vlaneseq
    %v740 = vshrl.u32 %v739, 7
    %v741 = vsub.s32 %v738, %v740
    %v742 = vrot.slane %v734, %v741
    %v744 = vunpack.c.l.s4 1934713408
    %v745 = vunpack.c.0.s8 %v744
    %v746 = vlaneseq
    %v747 = vshrl.u32 %v746, 7
    %v748 = vsub.s32 %v745, %v747
    %v749 = vrot.slane %v735, %v748
    %v750 = vcombine.low %v717, %v733
    %v751 = vcombine.high %v717, %v733
    %v753 = vunpack.c.l.s4 1934713408
    %v754 = vunpack.c.0.s8 %v753
    %v755 = vlaneseq
    %v756 = vshrl.u32 %v755, 7
    %v757 = vsub.s32 %v754, %v756
    %v758 = vrot.slane %v750, %v757
    %v760 = vunpack.c.l.s4 1934713408
    %v761 = vunpack.c.0.s8 %v760
    %v762 = vlaneseq
    %v763 = vshrl.u32 %v762, 7
    %v764 = vsub.s32 %v761, %v763
    %v765 = vrot.slane %v751, %v764
    %v766 = vcombine.high %v742, 0
    %v767 = vcombine.high %v749, 0
    %v768 = vcombine.high %v758, 0
    %v769 = vcombine.high %v765, 0
    %v770 = vcombine.low %v60, %v194
    %v771 = vcombine.high %v60, %v194
    %v773 = vunpack.c.l.s4 1983009808
    %v774 = vunpack.c.0.s8 %v773
    %v775 = vlaneseq
    %v776 = vshrl.u32 %v775, 7
    %v777 = vsub.s32 %v774, %v776
    %v778 = vrot.slane %v770, %v777
    %v780 = vunpack.c.l.s4 1983009808
    %v781 = vunpack.c.0.s8 %v780
    %v782 = vlaneseq
    %v783 = vshrl.u32 %v782, 7
    %v784 = vsub.s32 %v781, %v783
    %v785 = vrot.slane %v771, %v784
    %v786 = vcombine.low %v127, %v261
    %v787 = vcombine.high %v127, %v261
    %v789 = vunpack.c.l.s4 1983009808
    %v790 = vunpack.c.0.s8 %v789
    %v791 = vlaneseq
    %v792 = vshrl.u32 %v791, 7
    %v793 = vsub.s32 %v790, %v792
    %v794 = vrot.slane %v786, %v793
    %v796 = vunpack.c.l.s4 1983009808
    %v797 = vunpack.c.0.s8 %v796
    %v798 = vlaneseq
    %v799 = vshrl.u32 %v798, 7
    %v800 = vsub.s32 %v797, %v799
    %v801 = vrot.slane %v787, %v800
    %v802 = vcombine.low %v778, %v794
    %v803 = vcombine.high %v778, %v794
    %v805 = vunpack.c.l.s4 1934713408
    %v806 = vunpack.c.0.s8 %v805
    %v807 = vlaneseq
    %v808 = vshrl.u32 %v807, 7
    %v809 = vsub.s32 %v806, %v808
    %v810 = vrot.slane %v802, %v809
    %v812 = vunpack.c.l.s4 1934713408
    %v813 = vunpack.c.0.s8 %v812
    %v814 = vlaneseq
    %v815 = vshrl.u32 %v814, 7
    %v816 = vsub.s32 %v813, %v815
    %v817 = vrot.slane %v803, %v816
    %v818 = vcombine.low %v785, %v801
    %v819 = vcombine.high %v785, %v801
    %v821 = vunpack.c.l.s4 1934713408
    %v822 = vunpack.c.0.s8 %v821
    %v823 = vlaneseq
    %v824 = vshrl.u32 %v823, 7
    %v825 = vsub.s32 %v822, %v824
    %v826 = vrot.slane %v818, %v825
    %v828 = vunpack.c.l.s4 1934713408
    %v829 = vunpack.c.0.s8 %v828
    %v830 = vlaneseq
    %v831 = vshrl.u32 %v830, 7
    %v832 = vsub.s32 %v829, %v831
    %v833 = vrot.slane %v819, %v832
    %v834 = vcombine.high %v810, 0
    %v835 = vcombine.high %v817, 0
    %v836 = vcombine.high %v826, 0
    %v837 = vcombine.high %v833, 0
    %v838 = vcombine.low %v64, %v198
    %v839 = vcombine.high %v64, %v198
    %v841 = vunpack.c.l.s4 1983009808
    %v842 = vunpack.c.0.s8 %v841
    %v843 = vlaneseq
    %v844 = vshrl.u32 %v843, 7
    %v845 = vsub.s32 %v842, %v844
    %v846 = vrot.slane %v838, %v845
    %v848 = vunpack.c.l.s4 1983009808
    %v849 = vunpack.c.0.s8 %v848
    %v850 = vlaneseq
    %v851 = vshrl.u32 %v850, 7
    %v852 = vsub.s32 %v849, %v851
    %v853 = vrot.slane %v839, %v852
    %v854 = vcombine.low %v131, %v265
    %v855 = vcombine.high %v131, %v265
    %v857 = vunpack.c.l.s4 1983009808
    %v858 = vunpack.c.0.s8 %v857
    %v859 = vlaneseq
    %v860 = vshrl.u32 %v859, 7
    %v861 = vsub.s32 %v858, %v860
    %v862 = vrot.slane %v854, %v861
    %v864 = vunpack.c.l.s4 1983009808
    %v865 = vunpack.c.0.s8 %v864
    %v866 = vlaneseq
    %v867 = vshrl.u32 %v866, 7
    %v868 = vsub.s32 %v865, %v867
    %v869 = vrot.slane %v855, %v868
    %v870 = vcombine.low %v846, %v862
    %v871 = vcombine.high %v846, %v862
    %v873 = vunpack.c.l.s4 1934713408
    %v874 = vunpack.c.0.s8 %v873
    %v875 = vlaneseq
    %v876 = vshrl.u32 %v875, 7
    %v877 = vsub.s32 %v874, %v876
    %v878 = vrot.slane %v870, %v877
    %v880 = vunpack.c.l.s4 1934713408
    %v881 = vunpack.c.0.s8 %v880
    %v882 = vlaneseq
    %v883 = vshrl.u32 %v882, 7
    %v884 = vsub.s32 %v881, %v883
    %v885 = vrot.slane %v871, %v884
    %v886 = vcombine.low %v853, %v869
    %v887 = vcombine.high %v853, %v869
    %v889 = vunpack.c.l.s4 1934713408
    %v890 = vunpack.c.0.s8 %v889
    %v891 = vlaneseq
    %v892 = vshrl.u32 %v891, 7
    %v893 = vsub.s32 %v890, %v892
    %v894 = vrot.slane %v886, %v893
    %v896 = vunpack.c.l.s4 1934713408
    %v897 = vunpack.c.0.s8 %v896
    %v898 = vlaneseq
    %v899 = vshrl.u32 %v898, 7
    %v900 = vsub.s32 %v897, %v899
    %v901 = vrot.slane %v887, %v900
    %v902 = vcombine.high %v878, 0
    %v903 = vcombine.high %v885, 0
    %v904 = vcombine.high %v894, 0
    %v905 = vcombine.high %v901, 0
    %v906 = vcombine.low %v68, %v202
    %v907 = vcombine.high %v68, %v202
    %v909 = vunpack.c.l.s4 1983009808
    %v910 = vunpack.c.0.s8 %v909
    %v911 = vlaneseq
    %v912 = vshrl.u32 %v911, 7
    %v913 = vsub.s32 %v910, %v912
    %v914 = vrot.slane %v906, %v913
    %v916 = vunpack.c.l.s4 1983009808
    %v917 = vunpack.c.0.s8 %v916
    %v918 = vlaneseq
    %v919 = vshrl.u32 %v918, 7
    %v920 = vsub.s32 %v917, %v919
    %v921 = vrot.slane %v907, %v920
    %v922 = vcombine.low %v135, %v269
    %v923 = vcombine.high %v135, %v269
    %v925 = vunpack.c.l.s4 1983009808
    %v926 = vunpack.c.0.s8 %v925
    %v927 = vlaneseq
    %v928 = vshrl.u32 %v927, 7
    %v929 = vsub.s32 %v926, %v928
    %v930 = vrot.slane %v922, %v929
    %v932 = vunpack.c.l.s4 1983009808
    %v933 = vunpack.c.0.s8 %v932
    %v934 = vlaneseq
    %v935 = vshrl.u32 %v934, 7
    %v936 = vsub.s32 %v933, %v935
    %v937 = vrot.slane %v923, %v936
    %v938 = vcombine.low %v914, %v930
    %v939 = vcombine.high %v914, %v930
    %v941 = vunpack.c.l.s4 1934713408
    %v942 = vunpack.c.0.s8 %v941
    %v943 = vlaneseq
    %v944 = vshrl.u32 %v943, 7
    %v945 = vsub.s32 %v942, %v944
    %v946 = vrot.slane %v938, %v945
    %v948 = vunpack.c.l.s4 1934713408
    %v949 = vunpack.c.0.s8 %v948
    %v950 = vlaneseq
    %v951 = vshrl.u32 %v950, 7
    %v952 = vsub.s32 %v949, %v951
    %v953 = vrot.slane %v939, %v952
    %v954 = vcombine.low %v921, %v937
    %v955 = vcombine.high %v921, %v937
    %v957 = vunpack.c.l.s4 1934713408
    %v958 = vunpack.c.0.s8 %v957
    %v959 = vlaneseq
    %v960 = vshrl.u32 %v959, 7
    %v961 = vsub.s32 %v958, %v960
    %v962 = vrot.slane %v954, %v961
    %v964 = vunpack.c.l.s4 1934713408
    %v965 = vunpack.c.0.s8 %v964
    %v966 = vlaneseq
    %v967 = vshrl.u32 %v966, 7
    %v968 = vsub.s32 %v965, %v967
    %v969 = vrot.slane %v955, %v968
    %v970 = vcombine.high %v946, 0
    %v971 = vcombine.high %v953, 0
    %v972 = vcombine.high %v962, 0
    %v973 = vcombine.high %v969, 0
    %v974 = vcombine.low %v72, %v206
    %v975 = vcombine.high %v72, %v206
    %v977 = vunpack.c.l.s4 1983009808
    %v978 = vunpack.c.0.s8 %v977
    %v979 = vlaneseq
    %v980 = vshrl.u32 %v979, 7
    %v981 = vsub.s32 %v978, %v980
    %v982 = vrot.slane %v974, %v981
    %v984 = vunpack.c.l.s4 1983009808
    %v985 = vunpack.c.0.s8 %v984
    %v986 = vlaneseq
    %v987 = vshrl.u32 %v986, 7
    %v988 = vsub.s32 %v985, %v987
    %v989 = vrot.slane %v975, %v988
    %v990 = vcombine.low %v139, %v273
    %v991 = vcombine.high %v139, %v273
    %v993 = vunpack.c.l.s4 1983009808
    %v994 = vunpack.c.0.s8 %v993
    %v995 = vlaneseq
    %v996 = vshrl.u32 %v995, 7
    %v997 = vsub.s32 %v994, %v996
    %v998 = vrot.slane %v990, %v997
    %v1000 = vunpack.c.l.s4 1983009808
    %v1001 = vunpack.c.0.s8 %v1000
    %v1002 = vlaneseq
    %v1003 = vshrl.u32 %v1002, 7
    %v1004 = vsub.s32 %v1001, %v1003
    %v1005 = vrot.slane %v991, %v1004
    %v1006 = vcombine.low %v982, %v998
    %v1007 = vcombine.high %v982, %v998
    %v1009 = vunpack.c.l.s4 1934713408
    %v1010 = vunpack.c.0.s8 %v1009
    %v1011 = vlaneseq
    %v1012 = vshrl.u32 %v1011, 7
    %v1013 = vsub.s32 %v1010, %v1012
    %v1014 = vrot.slane %v1006, %v1013
    %v1016 = vunpack.c.l.s4 1934713408
    %v1017 = vunpack.c.0.s8 %v1016
    %v1018 = vlaneseq
    %v1019 = vshrl.u32 %v1018, 7
    %v1020 = vsub.s32 %v1017, %v1019
    %v1021 = vrot.slane %v1007, %v1020
    %v1022 = vcombine.low %v989, %v1005
    %v1023 = vcombine.high %v989, %v1005
    %v1025 = vunpack.c.l.s4 1934713408
    %v1026 = vunpack.c.0.s8 %v1025
    %v1027 = vlaneseq
    %v1028 = vshrl.u32 %v1027, 7
    %v1029 = vsub.s32 %v1026, %v1028
    %v1030 = vrot.slane %v1022, %v1029
    %v1032 = vunpack.c.l.s4 1934713408
    %v1033 = vunpack.c.0.s8 %v1032
    %v1034 = vlaneseq
    %v1035 = vshrl.u32 %v1034, 7
    %v1036 = vsub.s32 %v1033, %v1035
    %v1037 = vrot.slane %v1023, %v1036
    %v1038 = vcombine.high %v1014, 0
    %v1039 = vcombine.high %v1021, 0
    %v1040 = vcombine.high %v1030, 0
    %v1041 = vcombine.high %v1037, 0
    %v1042 = vcombine.low %v76, %v210
    %v1043 = vcombine.high %v76, %v210
    %v1045 = vunpack.c.l.s4 1983009808
    %v1046 = vunpack.c.0.s8 %v1045
    %v1047 = vlaneseq
    %v1048 = vshrl.u32 %v1047, 7
    %v1049 = vsub.s32 %v1046, %v1048
    %v1050 = vrot.slane %v1042, %v1049
    %v1052 = vunpack.c.l.s4 1983009808
    %v1053 = vunpack.c.0.s8 %v1052
    %v1054 = vlaneseq
    %v1055 = vshrl.u32 %v1054, 7
    %v1056 = vsub.s32 %v1053, %v1055
    %v1057 = vrot.slane %v1043, %v1056
    %v1058 = vcombine.low %v143, %v277
    %v1059 = vcombine.high %v143, %v277
    %v1061 = vunpack.c.l.s4 1983009808
    %v1062 = vunpack.c.0.s8 %v1061
    %v1063 = vlaneseq
    %v1064 = vshrl.u32 %v1063, 7
    %v1065 = vsub.s32 %v1062, %v1064
    %v1066 = vrot.slane %v1058, %v1065
    %v1068 = vunpack.c.l.s4 1983009808
    %v1069 = vunpack.c.0.s8 %v1068
    %v1070 = vlaneseq
    %v1071 = vshrl.u32 %v1070, 7
    %v1072 = vsub.s32 %v1069, %v1071
    %v1073 = vrot.slane %v1059, %v1072
    %v1074 = vcombine.low %v1050, %v1066
    %v1075 = vcombine.high %v1050, %v1066
    %v1077 = vunpack.c.l.s4 1934713408
    %v1078 = vunpack.c.0.s8 %v1077
    %v1079 = vlaneseq
    %v1080 = vshrl.u32 %v1079, 7
    %v1081 = vsub.s32 %v1078, %v1080
    %v1082 = vrot.slane %v1074, %v1081
    %v1084 = vunpack.c.l.s4 1934713408
    %v1085 = vunpack.c.0.s8 %v1084
    %v1086 = vlaneseq
    %v1087 = vshrl.u32 %v1086, 7
    %v1088 = vsub.s32 %v1085, %v1087
    %v1089 = vrot.slane %v1075, %v1088
    %v1090 = vcombine.low %v1057, %v1073
    %v1091 = vcombine.high %v1057, %v1073
    %v1093 = vunpack.c.l.s4 1934713408
    %v1094 = vunpack.c.0.s8 %v1093
    %v1095 = vlaneseq
    %v1096 = vshrl.u32 %v1095, 7
    %v1097 = vsub.s32 %v1094, %v1096
    %v1098 = vrot.slane %v1090, %v1097
    %v1100 = vunpack.c.l.s4 1934713408
    %v1101 = vunpack.c.0.s8 %v1100
    %v1102 = vlaneseq
    %v1103 = vshrl.u32 %v1102, 7
    %v1104 = vsub.s32 %v1101, %v1103
    %v1105 = vrot.slane %v1091, %v1104
    %v1106 = vcombine.high %v1082, 0
    %v1107 = vcombine.high %v1089, 0
    %v1108 = vcombine.high %v1098, 0
    %v1109 = vcombine.high %v1105, 0
    %v1110 = vcombine.low %v80, %v214
    %v1111 = vcombine.high %v80, %v214
    %v1113 = vunpack.c.l.s4 1983009808
    %v1114 = vunpack.c.0.s8 %v1113
    %v1115 = vlaneseq
    %v1116 = vshrl.u32 %v1115, 7
    %v1117 = vsub.s32 %v1114, %v1116
    %v1118 = vrot.slane %v1110, %v1117
    %v1120 = vunpack.c.l.s4 1983009808
    %v1121 = vunpack.c.0.s8 %v1120
    %v1122 = vlaneseq
    %v1123 = vshrl.u32 %v1122, 7
    %v1124 = vsub.s32 %v1121, %v1123
    %v1125 = vrot.slane %v1111, %v1124
    %v1126 = vcombine.low %v147, %v281
    %v1127 = vcombine.high %v147, %v281
    %v1129 = vunpack.c.l.s4 1983009808
    %v1130 = vunpack.c.0.s8 %v1129
    %v1131 = vlaneseq
    %v1132 = vshrl.u32 %v1131, 7
    %v1133 = vsub.s32 %v1130, %v1132
    %v1134 = vrot.slane %v1126, %v1133
    %v1136 = vunpack.c.l.s4 1983009808
    %v1137 = vunpack.c.0.s8 %v1136
    %v1138 = vlaneseq
    %v1139 = vshrl.u32 %v1138, 7
    %v1140 = vsub.s32 %v1137, %v1139
    %v1141 = vrot.slane %v1127, %v1140
    %v1142 = vcombine.low %v1118, %v1134
    %v1143 = vcombine.high %v1118, %v1134
    %v1145 = vunpack.c.l.s4 1934713408
    %v1146 = vunpack.c.0.s8 %v1145
    %v1147 = vlaneseq
    %v1148 = vshrl.u32 %v1147, 7
    %v1149 = vsub.s32 %v1146, %v1148
    %v1150 = vrot.slane %v1142, %v1149
    %v1152 = vunpack.c.l.s4 1934713408
    %v1153 = vunpack.c.0.s8 %v1152
    %v1154 = vlaneseq
    %v1155 = vshrl.u32 %v1154, 7
    %v1156 = vsub.s32 %v1153, %v1155
    %v1157 = vrot.slane %v1143, %v1156
    %v1158 = vcombine.low %v1125, %v1141
    %v1159 = vcombine.high %v1125, %v1141
    %v1161 = vunpack.c.l.s4 1934713408
    %v1162 = vunpack.c.0.s8 %v1161
    %v1163 = vlaneseq
    %v1164 = vshrl.u32 %v1163, 7
    %v1165 = vsub.s32 %v1162, %v1164
    %v1166 = vrot.slane %v1158, %v1165
    %v1168 = vunpack.c.l.s4 1934713408
    %v1169 = vunpack.c.0.s8 %v1168
    %v1170 = vlaneseq
    %v1171 = vshrl.u32 %v1170, 7
    %v1172 = vsub.s32 %v1169, %v1171
    %v1173 = vrot.slane %v1159, %v1172
    %v1174 = vcombine.high %v1150, 0
    %v1175 = vcombine.high %v1157, 0
    %v1176 = vcombine.high %v1166, 0
    %v1177 = vcombine.high %v1173, 0
    %v1178 = vcombine.low %v84, %v218
    %v1179 = vcombine.high %v84, %v218
    %v1181 = vunpack.c.l.s4 1983009808
    %v1182 = vunpack.c.0.s8 %v1181
    %v1183 = vlaneseq
    %v1184 = vshrl.u32 %v1183, 7
    %v1185 = vsub.s32 %v1182, %v1184
    %v1186 = vrot.slane %v1178, %v1185
    %v1188 = vunpack.c.l.s4 1983009808
    %v1189 = vunpack.c.0.s8 %v1188
    %v1190 = vlaneseq
    %v1191 = vshrl.u32 %v1190, 7
    %v1192 = vsub.s32 %v1189, %v1191
    %v1193 = vrot.slane %v1179, %v1192
    %v1194 = vcombine.low %v151, %v285
    %v1195 = vcombine.high %v151, %v285
    %v1197 = vunpack.c.l.s4 1983009808
    %v1198 = vunpack.c.0.s8 %v1197
    %v1199 = vlaneseq
    %v1200 = vshrl.u32 %v1199, 7
    %v1201 = vsub.s32 %v1198, %v1200
    %v1202 = vrot.slane %v1194, %v1201
    %v1204 = vunpack.c.l.s4 1983009808
    %v1205 = vunpack.c.0.s8 %v1204
    %v1206 = vlaneseq
    %v1207 = vshrl.u32 %v1206, 7
    %v1208 = vsub.s32 %v1205, %v1207
    %v1209 = vrot.slane %v1195, %v1208
    %v1210 = vcombine.low %v1186, %v1202
    %v1211 = vcombine.high %v1186, %v1202
    %v1213 = vunpack.c.l.s4 1934713408
    %v1214 = vunpack.c.0.s8 %v1213
    %v1215 = vlaneseq
    %v1216 = vshrl.u32 %v1215, 7
    %v1217 = vsub.s32 %v1214, %v1216
    %v1218 = vrot.slane %v1210, %v1217
    %v1220 = vunpack.c.l.s4 1934713408
    %v1221 = vunpack.c.0.s8 %v1220
    %v1222 = vlaneseq
    %v1223 = vshrl.u32 %v1222, 7
    %v1224 = vsub.s32 %v1221, %v1223
    %v1225 = vrot.slane %v1211, %v1224
    %v1226 = vcombine.low %v1193, %v1209
    %v1227 = vcombine.high %v1193, %v1209
    %v1229 = vunpack.c.l.s4 1934713408
    %v1230 = vunpack.c.0.s8 %v1229
    %v1231 = vlaneseq
    %v1232 = vshrl.u32 %v1231, 7
    %v1233 = vsub.s32 %v1230, %v1232
    %v1234 = vrot.slane %v1226, %v1233
    %v1236 = vunpack.c.l.s4 1934713408
    %v1237 = vunpack.c.0.s8 %v1236
    %v1238 = vlaneseq
    %v1239 = vshrl.u32 %v1238, 7
    %v1240 = vsub.s32 %v1237, %v1239
    %v1241 = vrot.slane %v1227, %v1240
    %v1242 = vcombine.high %v1218, 0
    %v1243 = vcombine.high %v1225, 0
    %v1244 = vcombine.high %v1234, 0
    %v1245 = vcombine.high %v1241, 0
    %v1246 = vcombine.low %v88, %v222
    %v1247 = vcombine.high %v88, %v222
    %v1249 = vunpack.c.l.s4 1983009808
    %v1250 = vunpack.c.0.s8 %v1249
    %v1251 = vlaneseq
    %v1252 = vshrl.u32 %v1251, 7
    %v1253 = vsub.s32 %v1250, %v1252
    %v1254 = vrot.slane %v1246, %v1253
    %v1256 = vunpack.c.l.s4 1983009808
    %v1257 = vunpack.c.0.s8 %v1256
    %v1258 = vlaneseq
    %v1259 = vshrl.u32 %v1258, 7
    %v1260 = vsub.s32 %v1257, %v1259
    %v1261 = vrot.slane %v1247, %v1260
    %v1262 = vcombine.low %v155, %v289
    %v1263 = vcombine.high %v155, %v289
    %v1265 = vunpack.c.l.s4 1983009808
    %v1266 = vunpack.c.0.s8 %v1265
    %v1267 = vlaneseq
    %v1268 = vshrl.u32 %v1267, 7
    %v1269 = vsub.s32 %v1266, %v1268
    %v1270 = vrot.slane %v1262, %v1269
    %v1272 = vunpack.c.l.s4 1983009808
    %v1273 = vunpack.c.0.s8 %v1272
    %v1274 = vlaneseq
    %v1275 = vshrl.u32 %v1274, 7
    %v1276 = vsub.s32 %v1273, %v1275
    %v1277 = vrot.slane %v1263, %v1276
    %v1278 = vcombine.low %v1254, %v1270
    %v1279 = vcombine.high %v1254, %v1270
    %v1281 = vunpack.c.l.s4 1934713408
    %v1282 = vunpack.c.0.s8 %v1281
    %v1283 = vlaneseq
    %v1284 = vshrl.u32 %v1283, 7
    %v1285 = vsub.s32 %v1282, %v1284
    %v1286 = vrot.slane %v1278, %v1285
    %v1288 = vunpack.c.l.s4 1934713408
    %v1289 = vunpack.c.0.s8 %v1288
    %v1290 = vlaneseq
    %v1291 = vshrl.u32 %v1290, 7
    %v1292 = vsub.s32 %v1289, %v1291
    %v1293 = vrot.slane %v1279, %v1292
    %v1294 = vcombine.low %v1261, %v1277
    %v1295 = vcombine.high %v1261, %v1277
    %v1297 = vunpack.c.l.s4 1934713408
    %v1298 = vunpack.c.0.s8 %v1297
    %v1299 = vlaneseq
    %v1300 = vshrl.u32 %v1299, 7
    %v1301 = vsub.s32 %v1298, %v1300
    %v1302 = vrot.slane %v1294, %v1301
    %v1304 = vunpack.c.l.s4 1934713408
    %v1305 = vunpack.c.0.s8 %v1304
    %v1306 = vlaneseq
    %v1307 = vshrl.u32 %v1306, 7
    %v1308 = vsub.s32 %v1305, %v1307
    %v1309 = vrot.slane %v1295, %v1308
    %v1310 = vcombine.high %v1286, 0
    %v1311 = vcombine.high %v1293, 0
    %v1312 = vcombine.high %v1302, 0
    %v1313 = vcombine.high %v1309, 0
    %v1314 = vcombine.low %v92, %v226
    %v1315 = vcombine.high %v92, %v226
    %v1317 = vunpack.c.l.s4 1983009808
    %v1318 = vunpack.c.0.s8 %v1317
    %v1319 = vlaneseq
    %v1320 = vshrl.u32 %v1319, 7
    %v1321 = vsub.s32 %v1318, %v1320
    %v1322 = vrot.slane %v1314, %v1321
    %v1324 = vunpack.c.l.s4 1983009808
    %v1325 = vunpack.c.0.s8 %v1324
    %v1326 = vlaneseq
    %v1327 = vshrl.u32 %v1326, 7
    %v1328 = vsub.s32 %v1325, %v1327
    %v1329 = vrot.slane %v1315, %v1328
    %v1330 = vcombine.low %v159, %v293
    %v1331 = vcombine.high %v159, %v293
    %v1333 = vunpack.c.l.s4 1983009808
    %v1334 = vunpack.c.0.s8 %v1333
    %v1335 = vlaneseq
    %v1336 = vshrl.u32 %v1335, 7
    %v1337 = vsub.s32 %v1334, %v1336
    %v1338 = vrot.slane %v1330, %v1337
    %v1340 = vunpack.c.l.s4 1983009808
    %v1341 = vunpack.c.0.s8 %v1340
    %v1342 = vlaneseq
    %v1343 = vshrl.u32 %v1342, 7
    %v1344 = vsub.s32 %v1341, %v1343
    %v1345 = vrot.slane %v1331, %v1344
    %v1346 = vcombine.low %v1322, %v1338
    %v1347 = vcombine.high %v1322, %v1338
    %v1349 = vunpack.c.l.s4 1934713408
    %v1350 = vunpack.c.0.s8 %v1349
    %v1351 = vlaneseq
    %v1352 = vshrl.u32 %v1351, 7
    %v1353 = vsub.s32 %v1350, %v1352
    %v1354 = vrot.slane %v1346, %v1353
    %v1356 = vunpack.c.l.s4 1934713408
    %v1357 = vunpack.c.0.s8 %v1356
    %v1358 = vlaneseq
    %v1359 = vshrl.u32 %v1358, 7
    %v1360 = vsub.s32 %v1357, %v1359
    %v1361 = vrot.slane %v1347, %v1360
    %v1362 = vcombine.low %v1329, %v1345
    %v1363 = vcombine.high %v1329, %v1345
    %v1365 = vunpack.c.l.s4 1934713408
    %v1366 = vunpack.c.0.s8 %v1365
    %v1367 = vlaneseq
    %v1368 = vshrl.u32 %v1367, 7
    %v1369 = vsub.s32 %v1366, %v1368
    %v1370 = vrot.slane %v1362, %v1369
    %v1372 = vunpack.c.l.s4 1934713408
    %v1373 = vunpack.c.0.s8 %v1372
    %v1374 = vlaneseq
    %v1375 = vshrl.u32 %v1374, 7
    %v1376 = vsub.s32 %v1373, %v1375
    %v1377 = vrot.slane %v1363, %v1376
    %v1378 = vcombine.high %v1354, 0
    %v1379 = vcombine.high %v1361, 0
    %v1380 = vcombine.high %v1370, 0
    %v1381 = vcombine.high %v1377, 0
    %1382 = vrot.lane.b32.xlu0 %v358, 4
    %v1383 = vpop.permute.xlu0 %1382
    %1384 = vrot.lane.b32.xlu0 %v341, 8
    %v1385 = vpop.permute.xlu0 %1384
    %1386 = vrot.lane.b32.xlu0 %v359, 12
    %v1387 = vpop.permute.xlu0 %1386
    %1388 = vrot.lane.b32.xlu0 %v350, 16
    %v1389 = vpop.permute.xlu0 %1388
    %1390 = vrot.lane.b32.xlu0 %v360, 20
    %v1391 = vpop.permute.xlu0 %1390
    %1392 = vrot.lane.b32.xlu0 %v357, 24
    %v1393 = vpop.permute.xlu0 %1392
    %1394 = vrot.lane.b32.xlu0 %v361, 28
    %v1395 = vpop.permute.xlu0 %1394
    %1396 = vrot.lane.b32.xlu0 %v402, 32
    %v1397 = vpop.permute.xlu0 %1396
    %1398 = vrot.lane.b32.xlu0 %v426, 36
    %v1399 = vpop.permute.xlu0 %1398
    %1400 = vrot.lane.b32.xlu0 %v409, 40
    %v1401 = vpop.permute.xlu0 %1400
    %1402 = vrot.lane.b32.xlu0 %v427, 44
    %v1403 = vpop.permute.xlu0 %1402
    %1404 = vrot.lane.b32.xlu0 %v418, 48
    %v1405 = vpop.permute.xlu0 %1404
    %1406 = vrot.lane.b32.xlu0 %v428, 52
    %v1407 = vpop.permute.xlu0 %1406
    %1408 = vrot.lane.b32.xlu0 %v425, 56
    %v1409 = vpop.permute.xlu0 %1408
    %1410 = vrot.lane.b32.xlu0 %v429, 60
    %v1411 = vpop.permute.xlu0 %1410
    %1412 = vrot.lane.b32.xlu0 %v470, 64
    %v1413 = vpop.permute.xlu0 %1412
    %1414 = vrot.lane.b32.xlu0 %v494, 68
    %v1415 = vpop.permute.xlu0 %1414
    %1416 = vrot.lane.b32.xlu0 %v477, 72
    %v1417 = vpop.permute.xlu0 %1416
    %1418 = vrot.lane.b32.xlu0 %v495, 76
    %v1419 = vpop.permute.xlu0 %1418
    %1420 = vrot.lane.b32.xlu0 %v486, 80
    %v1421 = vpop.permute.xlu0 %1420
    %1422 = vrot.lane.b32.xlu0 %v496, 84
    %v1423 = vpop.permute.xlu0 %1422
    %1424 = vrot.lane.b32.xlu0 %v493, 88
    %v1425 = vpop.permute.xlu0 %1424
    %1426 = vrot.lane.b32.xlu0 %v497, 92
    %v1427 = vpop.permute.xlu0 %1426
    %1428 = vrot.lane.b32.xlu0 %v538, 96
    %v1429 = vpop.permute.xlu0 %1428
    %1430 = vrot.lane.b32.xlu0 %v562, 100
    %v1431 = vpop.permute.xlu0 %1430
    %1432 = vrot.lane.b32.xlu0 %v545, 104
    %v1433 = vpop.permute.xlu0 %1432
    %1434 = vrot.lane.b32.xlu0 %v563, 108
    %v1435 = vpop.permute.xlu0 %1434
    %1436 = vrot.lane.b32.xlu0 %v554, 112
    %v1437 = vpop.permute.xlu0 %1436
    %1438 = vrot.lane.b32.xlu0 %v564, 116
    %v1439 = vpop.permute.xlu0 %1438
    %1440 = vrot.lane.b32.xlu0 %v561, 120
    %v1441 = vpop.permute.xlu0 %1440
    %1442 = vrot.lane.b32.xlu0 %v565, 124
    %v1443 = vpop.permute.xlu0 %1442
    %1444 = vrot.lane.b32.xlu0 %v630, 4
    %v1445 = vpop.permute.xlu0 %1444
    %1446 = vrot.lane.b32.xlu0 %v613, 8
    %v1447 = vpop.permute.xlu0 %1446
    %1448 = vrot.lane.b32.xlu0 %v631, 12
    %v1449 = vpop.permute.xlu0 %1448
    %1450 = vrot.lane.b32.xlu0 %v622, 16
    %v1451 = vpop.permute.xlu0 %1450
    %1452 = vrot.lane.b32.xlu0 %v632, 20
    %v1453 = vpop.permute.xlu0 %1452
    %1454 = vrot.lane.b32.xlu0 %v629, 24
    %v1455 = vpop.permute.xlu0 %1454
    %1456 = vrot.lane.b32.xlu0 %v633, 28
    %v1457 = vpop.permute.xlu0 %1456
    %1458 = vrot.lane.b32.xlu0 %v674, 32
    %v1459 = vpop.permute.xlu0 %1458
    %1460 = vrot.lane.b32.xlu0 %v698, 36
    %v1461 = vpop.permute.xlu0 %1460
    %1462 = vrot.lane.b32.xlu0 %v681, 40
    %v1463 = vpop.permute.xlu0 %1462
    %1464 = vrot.lane.b32.xlu0 %v699, 44
    %v1465 = vpop.permute.xlu0 %1464
    %1466 = vrot.lane.b32.xlu0 %v690, 48
    %v1467 = vpop.permute.xlu0 %1466
    %1468 = vrot.lane.b32.xlu0 %v700, 52
    %v1469 = vpop.permute.xlu0 %1468
    %1470 = vrot.lane.b32.xlu0 %v697, 56
    %v1471 = vpop.permute.xlu0 %1470
    %1472 = vrot.lane.b32.xlu0 %v701, 60
    %v1473 = vpop.permute.xlu0 %1472
    %1474 = vrot.lane.b32.xlu0 %v742, 64
    %v1475 = vpop.permute.xlu0 %1474
    %1476 = vrot.lane.b32.xlu0 %v766, 68
    %v1477 = vpop.permute.xlu0 %1476
    %1478 = vrot.lane.b32.xlu0 %v749, 72
    %v1479 = vpop.permute.xlu0 %1478
    %1480 = vrot.lane.b32.xlu0 %v767, 76
    %v1481 = vpop.permute.xlu0 %1480
    %1482 = vrot.lane.b32.xlu0 %v758, 80
    %v1483 = vpop.permute.xlu0 %1482
    %1484 = vrot.lane.b32.xlu0 %v768, 84
    %v1485 = vpop.permute.xlu0 %1484
    %1486 = vrot.lane.b32.xlu0 %v765, 88
    %v1487 = vpop.permute.xlu0 %1486
    %1488 = vrot.lane.b32.xlu0 %v769, 92
    %v1489 = vpop.permute.xlu0 %1488
    %1490 = vrot.lane.b32.xlu0 %v810, 96
    %v1491 = vpop.permute.xlu0 %1490
    %1492 = vrot.lane.b32.xlu0 %v834, 100
    %v1493 = vpop.permute.xlu0 %1492
    %1494 = vrot.lane.b32.xlu0 %v817, 104
    %v1495 = vpop.permute.xlu0 %1494
    %1496 = vrot.lane.b32.xlu0 %v835, 108
    %v1497 = vpop.permute.xlu0 %1496
    %1498 = vrot.lane.b32.xlu0 %v826, 112
    %v1499 = vpop.permute.xlu0 %1498
    %1500 = vrot.lane.b32.xlu0 %v836, 116
    %v1501 = vpop.permute.xlu0 %1500
    %1502 = vrot.lane.b32.xlu0 %v833, 120
    %v1503 = vpop.permute.xlu0 %1502
    %1504 = vrot.lane.b32.xlu0 %v837, 124
    %v1505 = vpop.permute.xlu0 %1504
    %1506 = vrot.lane.b32.xlu0 %v902, 4
    %v1507 = vpop.permute.xlu0 %1506
    %1508 = vrot.lane.b32.xlu0 %v885, 8
    %v1509 = vpop.permute.xlu0 %1508
    %1510 = vrot.lane.b32.xlu0 %v903, 12
    %v1511 = vpop.permute.xlu0 %1510
    %1512 = vrot.lane.b32.xlu0 %v894, 16
    %v1513 = vpop.permute.xlu0 %1512
    %1514 = vrot.lane.b32.xlu0 %v904, 20
    %v1515 = vpop.permute.xlu0 %1514
    %1516 = vrot.lane.b32.xlu0 %v901, 24
    %v1517 = vpop.permute.xlu0 %1516
    %1518 = vrot.lane.b32.xlu0 %v905, 28
    %v1519 = vpop.permute.xlu0 %1518
    %1520 = vrot.lane.b32.xlu0 %v946, 32
    %v1521 = vpop.permute.xlu0 %1520
    %1522 = vrot.lane.b32.xlu0 %v970, 36
    %v1523 = vpop.permute.xlu0 %1522
    %1524 = vrot.lane.b32.xlu0 %v953, 40
    %v1525 = vpop.permute.xlu0 %1524
    %1526 = vrot.lane.b32.xlu0 %v971, 44
    %v1527 = vpop.permute.xlu0 %1526
    %1528 = vrot.lane.b32.xlu0 %v962, 48
    %v1529 = vpop.permute.xlu0 %1528
    %1530 = vrot.lane.b32.xlu0 %v972, 52
    %v1531 = vpop.permute.xlu0 %1530
    %1532 = vrot.lane.b32.xlu0 %v969, 56
    %v1533 = vpop.permute.xlu0 %1532
    %1534 = vrot.lane.b32.xlu0 %v973, 60
    %v1535 = vpop.permute.xlu0 %1534
    %1536 = vrot.lane.b32.xlu0 %v1014, 64
    %v1537 = vpop.permute.xlu0 %1536
    %1538 = vrot.lane.b32.xlu0 %v1038, 68
    %v1539 = vpop.permute.xlu0 %1538
    %1540 = vrot.lane.b32.xlu0 %v1021, 72
    %v1541 = vpop.permute.xlu0 %1540
    %1542 = vrot.lane.b32.xlu0 %v1039, 76
    %v1543 = vpop.permute.xlu0 %1542
    %1544 = vrot.lane.b32.xlu0 %v1030, 80
    %v1545 = vpop.permute.xlu0 %1544
    %1546 = vrot.lane.b32.xlu0 %v1040, 84
    %v1547 = vpop.permute.xlu0 %1546
    %1548 = vrot.lane.b32.xlu0 %v1037, 88
    %v1549 = vpop.permute.xlu0 %1548
    %1550 = vrot.lane.b32.xlu0 %v1041, 92
    %v1551 = vpop.permute.xlu0 %1550
    %1552 = vrot.lane.b32.xlu0 %v1082, 96
    %v1553 = vpop.permute.xlu0 %1552
    %1554 = vrot.lane.b32.xlu0 %v1106, 100
    %v1555 = vpop.permute.xlu0 %1554
    %1556 = vrot.lane.b32.xlu0 %v1089, 104
    %v1557 = vpop.permute.xlu0 %1556
    %1558 = vrot.lane.b32.xlu0 %v1107, 108
    %v1559 = vpop.permute.xlu0 %1558
    %1560 = vrot.lane.b32.xlu0 %v1098, 112
    %v1561 = vpop.permute.xlu0 %1560
    %1562 = vrot.lane.b32.xlu0 %v1108, 116
    %v1563 = vpop.permute.xlu0 %1562
    %1564 = vrot.lane.b32.xlu0 %v1105, 120
    %v1565 = vpop.permute.xlu0 %1564
    %1566 = vrot.lane.b32.xlu0 %v1109, 124
    %v1567 = vpop.permute.xlu0 %1566
    %1568 = vrot.lane.b32.xlu0 %v1174, 4
    %v1569 = vpop.permute.xlu0 %1568
    %1570 = vrot.lane.b32.xlu0 %v1157, 8
    %v1571 = vpop.permute.xlu0 %1570
    %1572 = vrot.lane.b32.xlu0 %v1175, 12
    %v1573 = vpop.permute.xlu0 %1572
    %1574 = vrot.lane.b32.xlu0 %v1166, 16
    %v1575 = vpop.permute.xlu0 %1574
    %1576 = vrot.lane.b32.xlu0 %v1176, 20
    %v1577 = vpop.permute.xlu0 %1576
    %1578 = vrot.lane.b32.xlu0 %v1173, 24
    %v1579 = vpop.permute.xlu0 %1578
    %1580 = vrot.lane.b32.xlu0 %v1177, 28
    %v1581 = vpop.permute.xlu0 %1580
    %1582 = vrot.lane.b32.xlu0 %v1218, 32
    %v1583 = vpop.permute.xlu0 %1582
    %1584 = vrot.lane.b32.xlu0 %v1242, 36
    %v1585 = vpop.permute.xlu0 %1584
    %1586 = vrot.lane.b32.xlu0 %v1225, 40
    %v1587 = vpop.permute.xlu0 %1586
    %1588 = vrot.lane.b32.xlu0 %v1243, 44
    %v1589 = vpop.permute.xlu0 %1588
    %1590 = vrot.lane.b32.xlu0 %v1234, 48
    %v1591 = vpop.permute.xlu0 %1590
    %1592 = vrot.lane.b32.xlu0 %v1244, 52
    %v1593 = vpop.permute.xlu0 %1592
    %1594 = vrot.lane.b32.xlu0 %v1241, 56
    %v1595 = vpop.permute.xlu0 %1594
    %1596 = vrot.lane.b32.xlu0 %v1245, 60
    %v1597 = vpop.permute.xlu0 %1596
    %1598 = vrot.lane.b32.xlu0 %v1286, 64
    %v1599 = vpop.permute.xlu0 %1598
    %1600 = vrot.lane.b32.xlu0 %v1310, 68
    %v1601 = vpop.permute.xlu0 %1600
    %1602 = vrot.lane.b32.xlu0 %v1293, 72
    %v1603 = vpop.permute.xlu0 %1602
    %1604 = vrot.lane.b32.xlu0 %v1311, 76
    %v1605 = vpop.permute.xlu0 %1604
    %1606 = vrot.lane.b32.xlu0 %v1302, 80
    %v1607 = vpop.permute.xlu0 %1606
    %1608 = vrot.lane.b32.xlu0 %v1312, 84
    %v1609 = vpop.permute.xlu0 %1608
    %1610 = vrot.lane.b32.xlu0 %v1309, 88
    %v1611 = vpop.permute.xlu0 %1610
    %1612 = vrot.lane.b32.xlu0 %v1313, 92
    %v1613 = vpop.permute.xlu0 %1612
    %1614 = vrot.lane.b32.xlu0 %v1354, 96
    %v1615 = vpop.permute.xlu0 %1614
    %1616 = vrot.lane.b32.xlu0 %v1378, 100
    %v1617 = vpop.permute.xlu0 %1616
    %1618 = vrot.lane.b32.xlu0 %v1361, 104
    %v1619 = vpop.permute.xlu0 %1618
    %1620 = vrot.lane.b32.xlu0 %v1379, 108
    %v1621 = vpop.permute.xlu0 %1620
    %1622 = vrot.lane.b32.xlu0 %v1370, 112
    %v1623 = vpop.permute.xlu0 %1622
    %1624 = vrot.lane.b32.xlu0 %v1380, 116
    %v1625 = vpop.permute.xlu0 %1624
    %1626 = vrot.lane.b32.xlu0 %v1377, 120
    %v1627 = vpop.permute.xlu0 %1626
    %1628 = vrot.lane.b32.xlu0 %v1381, 124
    %v1629 = vpop.permute.xlu0 %1628
    %vm1630 = vcmask 31744
    %v1631 = vsel %vm1630, %v334, %v1383
    %vm1632 = vcmask 64512
    %v1633 = vsel %vm1632, %v1631, %v1385
    %vm1634 = vcmask 97280
    %v1635 = vsel %vm1634, %v1633, %v1387
    %vm1636 = vcmask 130048
    %v1637 = vsel %vm1636, %v1635, %v1389
    %vm1638 = vcmask 162816
    %v1639 = vsel %vm1638, %v1637, %v1391
    %vm1640 = vcmask 195584
    %v1641 = vsel %vm1640, %v1639, %v1393
    %vm1642 = vcmask 228352
    %v1643 = vsel %vm1642, %v1641, %v1395
    %vm1644 = vcmask 261120
    %v1645 = vsel %vm1644, %v1643, %v1397
    %vm1646 = vcmask 293888
    %v1647 = vsel %vm1646, %v1645, %v1399
    %vm1648 = vcmask 326656
    %v1649 = vsel %vm1648, %v1647, %v1401
    %vm1650 = vcmask 359424
    %v1651 = vsel %vm1650, %v1649, %v1403
    %vm1652 = vcmask 392192
    %v1653 = vsel %vm1652, %v1651, %v1405
    %vm1654 = vcmask 424960
    %v1655 = vsel %vm1654, %v1653, %v1407
    %vm1656 = vcmask 457728
    %v1657 = vsel %vm1656, %v1655, %v1409
    %vm1658 = vcmask 490496
    %v1659 = vsel %vm1658, %v1657, %v1411
    %vm1660 = vcmask 523264
    %v1661 = vsel %vm1660, %v1659, %v1413
    %vm1662 = vcmask 556032
    %v1663 = vsel %vm1662, %v1661, %v1415
    %vm1664 = vcmask 588800
    %v1665 = vsel %vm1664, %v1663, %v1417
    %vm1666 = vcmask 621568
    %v1667 = vsel %vm1666, %v1665, %v1419
    %vm1668 = vcmask 654336
    %v1669 = vsel %vm1668, %v1667, %v1421
    %vm1670 = vcmask 687104
    %v1671 = vsel %vm1670, %v1669, %v1423
    %vm1672 = vcmask 719872
    %v1673 = vsel %vm1672, %v1671, %v1425
    %vm1674 = vcmask 752640
    %v1675 = vsel %vm1674, %v1673, %v1427
    %vm1676 = vcmask 785408
    %v1677 = vsel %vm1676, %v1675, %v1429
    %vm1678 = vcmask 818176
    %v1679 = vsel %vm1678, %v1677, %v1431
    %vm1680 = vcmask 850944
    %v1681 = vsel %vm1680, %v1679, %v1433
    %vm1682 = vcmask 883712
    %v1683 = vsel %vm1682, %v1681, %v1435
    %vm1684 = vcmask 916480
    %v1685 = vsel %vm1684, %v1683, %v1437
    %vm1686 = vcmask 949248
    %v1687 = vsel %vm1686, %v1685, %v1439
    %vm1688 = vcmask 982016
    %v1689 = vsel %vm1688, %v1687, %v1441
    %vm1690 = vcmask 1014784
    %v1691 = vsel %vm1690, %v1689, %v1443
    %v1692 = vsel %vm1630, %v606, %v1445
    %v1693 = vsel %vm1632, %v1692, %v1447
    %v1694 = vsel %vm1634, %v1693, %v1449
    %v1695 = vsel %vm1636, %v1694, %v1451
    %v1696 = vsel %vm1638, %v1695, %v1453
    %v1697 = vsel %vm1640, %v1696, %v1455
    %v1698 = vsel %vm1642, %v1697, %v1457
    %v1699 = vsel %vm1644, %v1698, %v1459
    %v1700 = vsel %vm1646, %v1699, %v1461
    %v1701 = vsel %vm1648, %v1700, %v1463
    %v1702 = vsel %vm1650, %v1701, %v1465
    %v1703 = vsel %vm1652, %v1702, %v1467
    %v1704 = vsel %vm1654, %v1703, %v1469
    %v1705 = vsel %vm1656, %v1704, %v1471
    %v1706 = vsel %vm1658, %v1705, %v1473
    %v1707 = vsel %vm1660, %v1706, %v1475
    %v1708 = vsel %vm1662, %v1707, %v1477
    %v1709 = vsel %vm1664, %v1708, %v1479
    %v1710 = vsel %vm1666, %v1709, %v1481
    %v1711 = vsel %vm1668, %v1710, %v1483
    %v1712 = vsel %vm1670, %v1711, %v1485
    %v1713 = vsel %vm1672, %v1712, %v1487
    %v1714 = vsel %vm1674, %v1713, %v1489
    %v1715 = vsel %vm1676, %v1714, %v1491
    %v1716 = vsel %vm1678, %v1715, %v1493
    %v1717 = vsel %vm1680, %v1716, %v1495
    %v1718 = vsel %vm1682, %v1717, %v1497
    %v1719 = vsel %vm1684, %v1718, %v1499
    %v1720 = vsel %vm1686, %v1719, %v1501
    %v1721 = vsel %vm1688, %v1720, %v1503
    %v1722 = vsel %vm1690, %v1721, %v1505
    %v1723 = vsel %vm1630, %v878, %v1507
    %v1724 = vsel %vm1632, %v1723, %v1509
    %v1725 = vsel %vm1634, %v1724, %v1511
    %v1726 = vsel %vm1636, %v1725, %v1513
    %v1727 = vsel %vm1638, %v1726, %v1515
    %v1728 = vsel %vm1640, %v1727, %v1517
    %v1729 = vsel %vm1642, %v1728, %v1519
    %v1730 = vsel %vm1644, %v1729, %v1521
    %v1731 = vsel %vm1646, %v1730, %v1523
    %v1732 = vsel %vm1648, %v1731, %v1525
    %v1733 = vsel %vm1650, %v1732, %v1527
    %v1734 = vsel %vm1652, %v1733, %v1529
    %v1735 = vsel %vm1654, %v1734, %v1531
    %v1736 = vsel %vm1656, %v1735, %v1533
    %v1737 = vsel %vm1658, %v1736, %v1535
    %v1738 = vsel %vm1660, %v1737, %v1537
    %v1739 = vsel %vm1662, %v1738, %v1539
    %v1740 = vsel %vm1664, %v1739, %v1541
    %v1741 = vsel %vm1666, %v1740, %v1543
    %v1742 = vsel %vm1668, %v1741, %v1545
    %v1743 = vsel %vm1670, %v1742, %v1547
    %v1744 = vsel %vm1672, %v1743, %v1549
    %v1745 = vsel %vm1674, %v1744, %v1551
    %v1746 = vsel %vm1676, %v1745, %v1553
    %v1747 = vsel %vm1678, %v1746, %v1555
    %v1748 = vsel %vm1680, %v1747, %v1557
    %v1749 = vsel %vm1682, %v1748, %v1559
    %v1750 = vsel %vm1684, %v1749, %v1561
    %v1751 = vsel %vm1686, %v1750, %v1563
    %v1752 = vsel %vm1688, %v1751, %v1565
    %v1753 = vsel %vm1690, %v1752, %v1567
    %v1754 = vsel %vm1630, %v1150, %v1569
    %v1755 = vsel %vm1632, %v1754, %v1571
    %v1756 = vsel %vm1634, %v1755, %v1573
    %v1757 = vsel %vm1636, %v1756, %v1575
    %v1758 = vsel %vm1638, %v1757, %v1577
    %v1759 = vsel %vm1640, %v1758, %v1579
    %v1760 = vsel %vm1642, %v1759, %v1581
    %v1761 = vsel %vm1644, %v1760, %v1583
    %v1762 = vsel %vm1646, %v1761, %v1585
    %v1763 = vsel %vm1648, %v1762, %v1587
    %v1764 = vsel %vm1650, %v1763, %v1589
    %v1765 = vsel %vm1652, %v1764, %v1591
    %v1766 = vsel %vm1654, %v1765, %v1593
    %v1767 = vsel %vm1656, %v1766, %v1595
    %v1768 = vsel %vm1658, %v1767, %v1597
    %v1769 = vsel %vm1660, %v1768, %v1599
    %v1770 = vsel %vm1662, %v1769, %v1601
    %v1771 = vsel %vm1664, %v1770, %v1603
    %v1772 = vsel %vm1666, %v1771, %v1605
    %v1773 = vsel %vm1668, %v1772, %v1607
    %v1774 = vsel %vm1670, %v1773, %v1609
    %v1775 = vsel %vm1672, %v1774, %v1611
    %v1776 = vsel %vm1674, %v1775, %v1613
    %v1777 = vsel %vm1676, %v1776, %v1615
    %v1778 = vsel %vm1678, %v1777, %v1617
    %v1779 = vsel %vm1680, %v1778, %v1619
    %v1780 = vsel %vm1682, %v1779, %v1621
    %v1781 = vsel %vm1684, %v1780, %v1623
    %v1782 = vsel %vm1686, %v1781, %v1625
    %v1783 = vsel %vm1688, %v1782, %v1627
    %v1784 = vsel %vm1690, %v1783, %v1629
    %v1785 = vlaneseq
    %v1786 = vand.u32 %v1785, 127
    %v1787 = vadd.s32 %v1786, 128
    %v1788 = vadd.s32 %v1786, 256
    %v1789 = vadd.s32 %v1786, 384
    %vm1790 = vcmp.lt.s32.totalorder %v1786, 0
    %v1791 = vsub.s32 0, %v1786
    %v1792 = vsel %vm1790, %v1791, %v1786
    %v1793 = vshrl.u32 %v1792, 2
    %v1794 = vand.u32 %v1792, 3
    %v1795 = vsub.s32 0, %v1794
    %v1796 = vsel %vm1790, %v1795, %v1794
    %vm1797 = vcmp.lt.s32.totalorder %v1787, 0
    %v1798 = vsub.s32 0, %v1787
    %v1799 = vsel %vm1797, %v1798, %v1787
    %v1800 = vshrl.u32 %v1799, 2
    %v1801 = vand.u32 %v1799, 3
    %v1802 = vsub.s32 0, %v1801
    %v1803 = vsel %vm1797, %v1802, %v1801
    %vm1804 = vcmp.lt.s32.totalorder %v1788, 0
    %v1805 = vsub.s32 0, %v1788
    %v1806 = vsel %vm1804, %v1805, %v1788
    %v1807 = vshrl.u32 %v1806, 2
    %v1808 = vand.u32 %v1806, 3
    %v1809 = vsub.s32 0, %v1808
    %v1810 = vsel %vm1804, %v1809, %v1808
    %vm1811 = vcmp.lt.s32.totalorder %v1789, 0
    %v1812 = vsub.s32 0, %v1789
    %v1813 = vsel %vm1811, %v1812, %v1789
    %v1814 = vshrl.u32 %v1813, 2
    %v1815 = vand.u32 %v1813, 3
    %v1816 = vsub.s32 0, %v1815
    %v1817 = vsel %vm1811, %v1816, %v1815
    %vm1818 = vcmp.ne.s32.totalorder %v1796, 0
    %vm1819 = vcmp.ne.s32.totalorder %v1803, 0
    %vm1820 = vcmp.ne.s32.totalorder %v1810, 0
    %vm1821 = vcmp.ne.s32.totalorder %v1817, 0
    %vm1822 = vcmp.lt.s32.totalorder %v1796, 0
    %vm1823 = vcmp.lt.s32.totalorder %v1803, 0
    %vm1824 = vcmp.lt.s32.totalorder %v1810, 0
    %vm1825 = vcmp.lt.s32.totalorder %v1817, 0
    %vm1826 = vmand %vm1822, %vm1818
    %vm1827 = vmand %vm1823, %vm1819
    %vm1828 = vmand %vm1824, %vm1820
    %vm1829 = vmand %vm1825, %vm1821
    %v1830 = vadd.s32 %v1796, 4
    %v1831 = vadd.s32 %v1803, 4
    %v1832 = vadd.s32 %v1810, 4
    %v1833 = vadd.s32 %v1817, 4
    %v1834 = vsel %vm1826, %v1830, %v1796
    %v1835 = vsel %vm1827, %v1831, %v1803
    %v1836 = vsel %vm1828, %v1832, %v1810
    %v1837 = vsel %vm1829, %v1833, %v1817
    %v1838 = vsub.s32 3, %v1834
    %v1839 = vsub.s32 3, %v1835
    %v1840 = vsub.s32 3, %v1836
    %v1841 = vsub.s32 3, %v1837
    %v1842 = vshrl.u32 %v1691, %v1838
    %v1843 = vshrl.u32 %v1722, %v1839
    %v1844 = vshrl.u32 %v1753, %v1840
    %v1845 = vshrl.u32 %v1784, %v1841
    %v1846 = vand.u32 %v1842, 1
    %v1847 = vand.u32 %v1843, 1
    %v1848 = vand.u32 %v1844, 1
    %v1849 = vand.u32 %v1845, 1
    %v1850 = vcvt.s32.f32 %v1846
    %v1851 = vcvt.s32.f32 %v1847
    %v1852 = vcvt.s32.f32 %v1848
    %v1853 = vcvt.s32.f32 %v1849
    %v1858 = vcombine.low %v1850, %v1851
    %v1859 = vcombine.low %v1852, %v1853
    %1862 = vst [vmem:[#allocation5] sm:$0xff] %v1858
    %1863 = vst [vmem:[#allocation5 + $0x8] sm:$0xff] %v1859
    // Predicated region
    $region10: #{tpu_custom_call.1} parent=1 // pred_check
      _
    $region11: #{tpu_custom_call.1} parent=1 // pred_check_branch
      %1865 = sbr.rel (0) target = $region13
    $region12: #{tpu_custom_call.1} parent=1 // pred_region
      %s1867 = ssub.s32 256, 256
      %1868 = vsyncadd [#allocation4], %s1867
      %s1870 = sshll.u32 [#allocation5], 4
      %s1871 = int_to_ptr.vmem [resolvable:$true] %s1870
      %1873 = dma.vmem_to_hbm [thread:$0]  %s1871, 256, %s1, [#allocation4]
    $region13: #{tpu_custom_call.1} parent=1 // pred_fallthru
      _
    // Predicated region
    $region14: #{tpu_custom_call.1} parent=1 // pred_check
      _
    $region15: #{tpu_custom_call.1} parent=1 // pred_check_branch
      %1875 = sbr.rel (0) target = $region17
    $region16: #{tpu_custom_call.1} parent=1 // pred_region
      %1876 = dma.done [#allocation4], 256
    $region17: #{tpu_custom_call.1} parent=1 // pred_fallthru
      _
    %1877 = vsyncpa [#allocation3], 1
    %1878 = vsyncpa [#allocation4], 1

</llo_original>
